<compile_context>
chip_gen: v6e
topology: v6e:2x2x1
jax: 0.10.0
libtpu: 0.0.40
codegen_flags: <defaults>
</compile_context>

<pallas_src>
import jax
import jax.numpy as jnp
from jax.experimental import pallas as pl
from jax.experimental.pallas import tpu as pltpu


# --------------------------------------------------------------------------- #
# Kernel: o = (-|hooke|) * x[:, :out_cols]   (out_cols == cols -> plain scale) #
# --------------------------------------------------------------------------- #
def _scale_kernel(hooke_ref, x_ref, o_ref):
    # hooke_ref: (1,) f32 scalar in SMEM. Negation folded into the scalar.
    neg_k = -jnp.abs(hooke_ref[0])            # stays f32
    x = x_ref[...]
    out_c = o_ref.shape[-1]
    if out_c != x.shape[-1]:                  # static column drop inside kernel
        x = x[:, :out_c]
    o_ref[...] = (x * neg_k).astype(o_ref.dtype)


# --------------------------------------------------------------------------- #
# Device-adaptive knobs                                                       #
# --------------------------------------------------------------------------- #
_TILE_BUDGET_BYTES = 24 * 1024 * 1024   # 2 pipeline buffers x (in tile + out tile)
_VMEM_LIMIT_CACHE = []
_DIM_SEM_CACHE = []


def _vmem_limit_bytes():
    """Half of physical VMEM, never below 32 MiB.
    v5e/v6e (128 MiB physical) -> 64 MiB ; v7x (64 MiB physical) -> 32 MiB."""
    if _VMEM_LIMIT_CACHE:
        return _VMEM_LIMIT_CACHE[0]
    try:
        cap = int(pltpu.get_tpu_info().vmem_capacity_bytes)
    except Exception:
        cap = 64 * 1024 * 1024
    limit = max(32 * 1024 * 1024, cap // 2)
    _VMEM_LIMIT_CACHE.append(limit)
    return limit


def _build_scale_call(rows, cols, out_cols, tm, dtype, dim_semantics):
    return pl.pallas_call(
        _scale_kernel,
        out_shape=jax.ShapeDtypeStruct((rows, out_cols), dtype),
        grid=(pl.cdiv(rows, tm),),
        in_specs=[
            pl.BlockSpec(memory_space=pltpu.SMEM),        # hooke scalar in SMEM
            pl.BlockSpec((tm, cols), lambda i: (i, 0)),   # row-tiled input
        ],
        out_specs=pl.BlockSpec((tm, out_cols), lambda i: (i, 0)),
        compiler_params=pltpu.CompilerParams(
            dimension_semantics=dim_semantics,
            vmem_limit_bytes=_vmem_limit_bytes(),
        ),
    )


def _dim_semantics():
    """Prefer CORE_PARALLEL on the row axis (splits grid steps across both
    v7x TensorCores). Verified once with a small numerical probe; falls back
    to plain "parallel" if the target rejects it or results mismatch."""
    if _DIM_SEM_CACHE:
        return _DIM_SEM_CACHE[0]
    choice = ("parallel",)
    if hasattr(pltpu, "CORE_PARALLEL"):
        try:
            k = jnp.array([0.5], dtype=jnp.float32)
            xp = jnp.arange(16 * 256, dtype=jnp.float32).reshape(16, 256)
            got = _build_scale_call(16, 256, 256, 8, jnp.float32,
                                    (pltpu.CORE_PARALLEL,))(k, xp)
            if bool(jnp.allclose(got, -0.5 * xp, rtol=1e-6, atol=1e-6)):
                choice = (pltpu.CORE_PARALLEL,)
        except Exception:
            pass
    _DIM_SEM_CACHE.append(choice)
    return choice


def _scaled(x2, hooke, out_cols):
    """y = -|hooke| * x2[:, :out_cols] for a 2-D array, row-tiled + pipelined."""
    rows, cols = x2.shape
    itemsize = jnp.dtype(x2.dtype).itemsize
    per_row_bytes = 2 * (cols + out_cols) * itemsize     # 2 buffers per operand
    tm = _TILE_BUDGET_BYTES // per_row_bytes
    tm = max(8, (tm // 8) * 8)                            # sublane-aligned
    if rows <= tm:
        tm = rows                                         # full dim == always legal
    call = _build_scale_call(rows, cols, out_cols, tm, x2.dtype, _dim_semantics())
    return call(hooke, x2)


def _best_lane_width(total, cap=32768):
    """Largest divisor of `total` that is a multiple of 128 (<= cap), or None."""
    if total % 128 != 0:
        return None
    q = total // 128
    for m in range(min(q, cap // 128), 0, -1):
        if q % m == 0:
            return 128 * m
    return 128


def spring_forward(x: jax.Array, hooke: jax.Array) -> jax.Array:
    """dxdt = -x[:, :-1] * |hooke|  (matches spring_model.forward)."""
    n, d = x.shape
    out_cols = d - 1
    hooke = jnp.asarray(hooke, jnp.float32).reshape((1,))

    # Wide states: drop the last column *inside* the kernel so the output is
    # written to HBM exactly once (no post-kernel slice => no extra HBM pass).
    if out_cols >= 256:
        return _scaled(x, hooke, out_cols)

    # Narrow states: the scale is elementwise over the whole array, so present
    # it in the most lane-dense 2-D view available and drop the (tiny) last
    # column in the wrapper afterwards.
    total = n * d
    lane_c = _best_lane_width(total)
    if lane_c is not None:
        x2 = x.reshape(total // lane_c, lane_c)
        y = _scaled(x2, hooke, lane_c).reshape(n, d)
    else:
        # No 128-divisible factorisation: pad the flat array to a multiple of
        # 1024 (8x128) so the kernel still issues full-lane, unmasked stores.
        pad = (-total) % 1024
        flat = jnp.pad(x.reshape(-1), (0, pad))
        x2 = flat.reshape(-1, 1024)
        y = _scaled(x2, hooke, 1024).reshape(-1)[:total].reshape(n, d)
    return y[:, :-1]


if __name__ == "__main__":
    # Parameter init matches nn.Parameter(torch.zeros(1) + 0.1).
    hooke = jnp.zeros((1,), dtype=jnp.float32) + 0.1

    key = jax.random.PRNGKey(0)
    k0, k1, k2, k3 = jax.random.split(key, 4)

    def ref(xx):
        return -xx[:, :-1] * jnp.abs(hooke)[0]

    # 1) Primary shape implied by the module (dim=2 -> state length 3).
    x_small = jax.random.normal(k0, (8, 3), dtype=jnp.float32)
    out_small = jax.block_until_ready(spring_forward(x_small, hooke))
    assert out_small.shape == (8, 2)
    assert jnp.allclose(out_small, ref(x_small), atol=1e-6, rtol=1e-6)

    # 2) Wide state: exercises the in-kernel column-drop path (D-1 >= 256).
    x_wide = jax.random.normal(k1, (64, 384), dtype=jnp.float32)
    out_wide = jax.block_until_ready(spring_forward(x_wide, hooke))
    assert out_wide.shape == (64, 383)
    assert jnp.allclose(out_wide, ref(x_wide), atol=1e-6, rtol=1e-6)

    # 3) Lane-dense reshape path (flat size divisible by 128).
    x_dense = jax.random.normal(k2, (256, 4), dtype=jnp.float32)
    out_dense = jax.block_until_ready(spring_forward(x_dense, hooke))
    assert out_dense.shape == (256, 3)
    assert jnp.allclose(out_dense, ref(x_dense), atol=1e-6, rtol=1e-6)

    # 4) Pad-to-1024 fallback path (flat size not divisible by 128).
    x_ragged = jax.random.normal(k3, (50, 5), dtype=jnp.float32)
    out_ragged = jax.block_until_ready(spring_forward(x_ragged, hooke))
    assert out_ragged.shape == (50, 4)
    assert jnp.allclose(out_ragged, ref(x_ragged), atol=1e-6, rtol=1e-6)

    print("KERNEL_OK")
</pallas_src>

<mosaic_0001>
module attributes {stable_mosaic.version = 11 : i64} {
  func.func @_scale_kernel(%arg0: i32, %arg1: memref<1xf32, #tpu.memory_space<smem>>, %arg2: memref<8x256xf32, #tpu.memory_space<vmem>>, %arg3: memref<8x256xf32, #tpu.memory_space<vmem>>) attributes {dimension_semantics = [#tpu.dimension_semantics<core_parallel>], iteration_bounds = array<i64: 2>, scalar_prefetch = 0 : i64, scratch_operands = 0 : i64, tpu.core_type = #tpu.core_type<tc>, window_params = [{transform_indices = @transform_0, window_bounds = array<i64: 1>}, {transform_indices = @transform_1, window_bounds = array<i64: 8, 256>}, {transform_indices = @transform_2, window_bounds = array<i64: 8, 256>}]} {
    %c0 = arith.constant 0 : index
    %0 = memref.load %arg1[%c0] : memref<1xf32, #tpu.memory_space<smem>>
    %1 = math.absf %0 : f32
    %cst = arith.constant 0.000000e+00 : f32
    %2 = arith.subf %cst, %1 : f32
    %c0_0 = arith.constant 0 : index
    %c0_1 = arith.constant 0 : index
    %3 = vector.load %arg2[%c0_0, %c0_1] : memref<8x256xf32, #tpu.memory_space<vmem>>, vector<8x256xf32>
    %4 = vector.broadcast %2 : f32 to vector<8x256xf32>
    %5 = arith.mulf %3, %4 : vector<8x256xf32>
    %c0_2 = arith.constant 0 : index
    %c0_3 = arith.constant 0 : index
    %6 = vector.load %arg3[%c0_2, %c0_3] : memref<8x256xf32, #tpu.memory_space<vmem>>, vector<8x256xf32>
    tpu.vector_store %arg3[%c0_2, %c0_3], %5 {strides = array<i32>} : memref<8x256xf32, #tpu.memory_space<vmem>>, vector<8x256xf32>,
    return
  }
  func.func @transform_0(%arg0: i32) -> i32 {
    %c0_i32 = arith.constant 0 : i32
    %c0_i32_0 = arith.constant 0 : i32
    return %c0_i32 : i32
  }
  func.func @transform_1(%arg0: i32) -> (i32, i32) {
    %c0_i32 = arith.constant 0 : i32
    %c0_i32_0 = arith.constant 0 : i32
    return %arg0, %c0_i32 : i32, i32
  }
  func.func @transform_2(%arg0: i32) -> (i32, i32) {
    %c0_i32 = arith.constant 0 : i32
    %c0_i32_0 = arith.constant 0 : i32
    return %arg0, %c0_i32 : i32, i32
  }
}

module attributes {stable_mosaic.version = 11 : i64} {
  func.func @_scale_kernel(%arg0: i32, %arg1: memref<1xf32, #tpu.memory_space<smem>>, %arg2: memref<1x1024xf32, #tpu.memory_space<vmem>>, %arg3: memref<1x1024xf32, #tpu.memory_space<vmem>>) attributes {dimension_semantics = [#tpu.dimension_semantics<parallel>], iteration_bounds = array<i64: 1>, scalar_prefetch = 0 : i64, scratch_operands = 0 : i64, tpu.core_type = #tpu.core_type<tc>, window_params = [{transform_indices = @transform_0, window_bounds = array<i64: 1>}, {transform_indices = @transform_1, window_bounds = array<i64: 1, 1024>}, {transform_indices = @transform_2, window_bounds = array<i64: 1, 1024>}]} {
    %c0 = arith.constant 0 : index
    %0 = memref.load %arg1[%c0] : memref<1xf32, #tpu.memory_space<smem>>
    %1 = math.absf %0 : f32
    %cst = arith.constant 0.000000e+00 : f32
    %2 = arith.subf %cst, %1 : f32
    %c0_0 = arith.constant 0 : index
    %c0_1 = arith.constant 0 : index
    %3 = vector.load %arg2[%c0_0, %c0_1] : memref<1x1024xf32, #tpu.memory_space<vmem>>, vector<1x1024xf32>
    %4 = vector.broadcast %2 : f32 to vector<1x1024xf32>
    %5 = arith.mulf %3, %4 : vector<1x1024xf32>
    %c0_2 = arith.constant 0 : index
    %c0_3 = arith.constant 0 : index
    %6 = vector.load %arg3[%c0_2, %c0_3] : memref<1x1024xf32, #tpu.memory_space<vmem>>, vector<1x1024xf32>
    tpu.vector_store %arg3[%c0_2, %c0_3], %5 {strides = array<i32>} : memref<1x1024xf32, #tpu.memory_space<vmem>>, vector<1x1024xf32>,
    return
  }
  func.func @transform_0(%arg0: i32) -> i32 {
    %c0_i32 = arith.constant 0 : i32
    %c0_i32_0 = arith.constant 0 : i32
    return %c0_i32 : i32
  }
  func.func @transform_1(%arg0: i32) -> (i32, i32) {
    %c0_i32 = arith.constant 0 : i32
    %c0_i32_0 = arith.constant 0 : i32
    return %arg0, %c0_i32 : i32, i32
  }
  func.func @transform_2(%arg0: i32) -> (i32, i32) {
    %c0_i32 = arith.constant 0 : i32
    %c0_i32_0 = arith.constant 0 : i32
    return %arg0, %c0_i32 : i32, i32
  }
}

</mosaic_0001>

<llo_original>
// kernel: tpu_custom_call.1
$region0: #{tpu_custom_call.1}
  #allocation0 [shape = 'u32[]', space=smem, size = 0x4, offset = 0x4, fixed_abs, tag = 'smem constant byte address 0x4 - core index']
  #allocation1 [shape = 'u32[144,128]{1,0:T(1,128)}', space=vmem, size = 0x12000, scoped, tag = 'internal scratch']
  #allocation2 [shape = 'f32[1]{0:T(128)S(6)}', space=smem, size = 0x200, scoped, tag = 'scoped memory for tpu_custom_call.1']
  %s0 = inlined_call_operand.<no memory space> [shape: f32[1], index: 0, kind: input, shape index: {}]
  %s1 = inlined_call_operand.hbm [shape: f32[1,1024], index: 1, kind: input, shape index: {}]
  %s2 = inlined_call_operand.hbm [shape: f32[1,1024], index: 2, kind: output, shape index: {}]
  %s3 = sld [smem:[#allocation0]]
  $region22: #{tpu_custom_call.1} parent=0
    _
  %s5 = ssub.s32 1, %s3
  %s6 = scalar_select 0, %s5, %s3
  %7 = sst [smem:[#allocation2]] %s0
  $region1: #{tpu_custom_call.1} parent=0
    #allocation3 [shape = 'u8[4096]{0}', space=vmem, size = 0x1000, scoped, tag = 'input window, operand 1, single buffered']
    #allocation4 [shape = 's32[1]{0}', space=sflag, size = 0x4, scoped, tag = 'scoped memory for tpu_custom_call.1']
    #allocation5 [shape = 's32[1]{0}', space=sflag, size = 0x4, scoped, tag = 'scoped memory for tpu_custom_call.1']
    #allocation6 [shape = 'u8[4096]{0}', space=vmem, size = 0x1000, scoped, tag = 'output window, operand 0, single buffered']
    %8 = vsyncpa [#allocation4], 0
    %9 = vsyncpa [#allocation5], 0
    // Predicated region
    $region2: #{tpu_custom_call.1} parent=1 // pred_check
      _
    $region3: #{tpu_custom_call.1} parent=1 // pred_check_branch
      %11 = sbr.rel (0) target = $region5
    $region4: #{tpu_custom_call.1} parent=1 // pred_region
      _
    $region5: #{tpu_custom_call.1} parent=1 // pred_fallthru
      _
    // Predicated region
    $region6: #{tpu_custom_call.1} parent=1 // pred_check
      _
    $region7: #{tpu_custom_call.1} parent=1 // pred_check_branch
      %13 = sbr.rel (0) target = $region9
    $region8: #{tpu_custom_call.1} parent=1 // pred_region
      %s15 = ssub.s32 128, 128
      %16 = vsyncadd [#allocation4], %s15
      %s18 = sshll.u32 [#allocation3], 4
      %s19 = int_to_ptr.vmem [resolvable:$true] %s18
      %21 = dma.hbm_to_vmem [thread:$0]  %s1, 128, %s19, [#allocation4]
    $region9: #{tpu_custom_call.1} parent=1 // pred_fallthru
      _
    // Predicated region
    $region10: #{tpu_custom_call.1} parent=1 // pred_check
      _
    $region11: #{tpu_custom_call.1} parent=1 // pred_check_branch
      %23 = sbr.rel (0) target = $region13
    $region12: #{tpu_custom_call.1} parent=1 // pred_region
      %24 = dma.done [#allocation4], 128
    $region13: #{tpu_custom_call.1} parent=1 // pred_fallthru
      _
    %s25 = sld [smem:[#allocation2]]
    %s26 = sand.u32 2147483647, %s25
    %s27 = ssub.f32 0.0, %s26
    %v28 = vld [vmem:[#allocation3] sm:$0xff]
    %v29 = vstv %s27
    %v30 = vmul.f32 %v28, %v29
    %31 = vst [vmem:[#allocation6] sm:$0xff] %v30
    // Predicated region
    $region14: #{tpu_custom_call.1} parent=1 // pred_check
      _
    $region15: #{tpu_custom_call.1} parent=1 // pred_check_branch
      %33 = sbr.rel (0) target = $region17
    $region16: #{tpu_custom_call.1} parent=1 // pred_region
      %s35 = ssub.s32 128, 128
      %36 = vsyncadd [#allocation5], %s35
      %s38 = sshll.u32 [#allocation6], 4
      %s39 = int_to_ptr.vmem [resolvable:$true] %s38
      %41 = dma.vmem_to_hbm [thread:$0]  %s39, 128, %s2, [#allocation5]
    $region17: #{tpu_custom_call.1} parent=1 // pred_fallthru
      _
    // Predicated region
    $region18: #{tpu_custom_call.1} parent=1 // pred_check
      _
    $region19: #{tpu_custom_call.1} parent=1 // pred_check_branch
      %43 = sbr.rel (0) target = $region21
    $region20: #{tpu_custom_call.1} parent=1 // pred_region
      %44 = dma.done [#allocation5], 128
    $region21: #{tpu_custom_call.1} parent=1 // pred_fallthru
      _
    %45 = vsyncpa [#allocation4], 1
    %46 = vsyncpa [#allocation5], 1

</llo_original>
